<compile_context>
chip_gen: v7x
topology: tpu7x:2x2x1
jax: 0.10.0
libtpu: 0.0.40
codegen_flags: <defaults>
</compile_context>

<pallas_src>
import functools

import jax
import jax.numpy as jnp
from jax.experimental import pallas as pl
from jax.experimental.pallas import tpu as pltpu


# ----------------------------------------------------------------------------
# Pallas kernel: fused squeeze -> FC -> ReLU -> FC -> HardSigmoid -> rescale
# ----------------------------------------------------------------------------
def _se_kernel(x_ref, w1_ref, w2_ref, o_ref, *, inv_hw):
    # x_ref / o_ref : [1, C, HW]   one batch element; HW on the lane axis
    # w1_ref        : [Cr, C]      PyTorch Linear weight layout ([out, in])
    # w2_ref        : [C, Cr]
    x = x_ref[0]                                   # [C, HW]
    _, hw = x.shape
    xf = x.astype(jnp.float32)

    # Squeeze: global average pool over HW as a matmul against a (1/HW) vector
    # (rides the MXU; avoids a cross-lane XLU reduction).
    pool_vec = jnp.full((hw, 1), inv_hw, dtype=jnp.float32)
    pooled = jnp.dot(xf, pool_vec, preferred_element_type=jnp.float32)      # [C, 1]

    # Excitation: two bias-free FCs on the pooled column vector (tiny matmuls;
    # the MXU is otherwise idle at this point, so occupancy doesn't matter).
    hid = jnp.dot(w1_ref[...], pooled, preferred_element_type=jnp.float32)  # [Cr, 1]
    hid = jnp.maximum(hid, 0.0)                                             # ReLU
    y = jnp.dot(w2_ref[...], hid, preferred_element_type=jnp.float32)       # [C, 1]
    gate = jnp.clip(y + 3.0, 0.0, 6.0) * (1.0 / 6.0)                        # HardSigmoid

    # Rescale: lane-broadcast of the per-channel gate; lane-dense store.
    o_ref[0] = (xf * gate).astype(o_ref.dtype)


# ----------------------------------------------------------------------------
# public wrapper: NCHW in, NCHW out (matches SEModule.forward)
# ----------------------------------------------------------------------------
def se_module(x_nchw, w1, w2, *, vmem_limit_bytes=32 * 1024 * 1024):
    """Squeeze-and-Excitation.  x: [B,C,H,W]; w1: [C//r, C]; w2: [C, C//r]."""
    b, c, h, w = x_nchw.shape
    hw = h * w
    cr = w1.shape[0]
    assert w1.shape == (cr, c), (w1.shape, (cr, c))
    assert w2.shape == (c, cr), (w2.shape, (c, cr))

    # NCHW -> [B, C, H*W] is a pure reshape (no transpose): channels land on the
    # sublane axis, flattened spatial on the lane axis (lane-dense for HW>=128).
    x3 = x_nchw.reshape(b, c, hw)

    kern = functools.partial(_se_kernel, inv_hw=1.0 / float(hw))
    y3 = pl.pallas_call(
        kern,
        out_shape=jax.ShapeDtypeStruct((b, c, hw), x_nchw.dtype),
        grid=(b,),
        in_specs=[
            pl.BlockSpec((1, c, hw), lambda i: (i, 0, 0)),   # one batch element
            pl.BlockSpec((cr, c), lambda i: (0, 0)),         # whole FC1 weight
            pl.BlockSpec((c, cr), lambda i: (0, 0)),         # whole FC2 weight
        ],
        out_specs=pl.BlockSpec((1, c, hw), lambda i: (i, 0, 0)),
        compiler_params=pltpu.CompilerParams(
            dimension_semantics=("parallel",),    # shard batch across TCs on v7x
            vmem_limit_bytes=vmem_limit_bytes,    # explicit budget (v5e default=16MiB)
        ),
    )(x3, w1, w2)
    return y3.reshape(b, c, h, w)


# ----------------------------------------------------------------------------
# pure-JAX reference (mirrors the PyTorch module exactly)
# ----------------------------------------------------------------------------
def se_reference(x, w1, w2):
    pooled = jnp.mean(x.astype(jnp.float32), axis=(2, 3))          # [B, C]
    hid = jnp.maximum(pooled @ w1.T, 0.0)                          # [B, C//r]
    y = hid @ w2.T                                                 # [B, C]
    gate = jnp.clip(y + 3.0, 0.0, 6.0) / 6.0                       # HardSigmoid
    return (x.astype(jnp.float32) * gate[:, :, None, None]).astype(x.dtype)


if __name__ == "__main__":
    key = jax.random.PRNGKey(0)
    kx, k1, k2 = jax.random.split(key, 3)

    B, C, H, W = 2, 64, 16, 16          # small shapes consistent with the module
    REDUCTION = 4
    CR = C // REDUCTION

    x = jax.random.normal(kx, (B, C, H, W), jnp.float32)
    w1 = jax.random.normal(k1, (CR, C), jnp.float32) / jnp.sqrt(float(C))
    w2 = jax.random.normal(k2, (C, CR), jnp.float32) / jnp.sqrt(float(CR))

    fwd = jax.jit(se_module)
    out = jax.block_until_ready(fwd(x, w1, w2))

    assert out.shape == x.shape, (out.shape, x.shape)
    assert out.dtype == x.dtype
    assert bool(jnp.all(jnp.isfinite(out)))

    ref = se_reference(x, w1, w2)
    assert bool(jnp.allclose(out, ref, rtol=1e-2, atol=1e-2)), (
        float(jnp.max(jnp.abs(out - ref))))

    print("KERNEL_OK")
</pallas_src>

<mosaic_0001>
module attributes {stable_mosaic.version = 11 : i64} {
  func.func @_se_kernel(%arg0: i32, %arg1: memref<1x64x256xf32, #tpu.memory_space<vmem>>, %arg2: memref<16x64xf32, #tpu.memory_space<vmem>>, %arg3: memref<64x16xf32, #tpu.memory_space<vmem>>, %arg4: memref<1x64x256xf32, #tpu.memory_space<vmem>>) attributes {dimension_semantics = [#tpu.dimension_semantics<parallel>], iteration_bounds = array<i64: 2>, scalar_prefetch = 0 : i64, scratch_operands = 0 : i64, tpu.core_type = #tpu.core_type<tc>, window_params = [{transform_indices = @transform_0, window_bounds = array<i64: 1, 64, 256>}, {pipeline_mode = #tpu.pipeline_mode<synchronous>, transform_indices = @transform_1, window_bounds = array<i64: 16, 64>}, {pipeline_mode = #tpu.pipeline_mode<synchronous>, transform_indices = @transform_2, window_bounds = array<i64: 64, 16>}, {transform_indices = @transform_3, window_bounds = array<i64: 1, 64, 256>}]} {
    %c0 = arith.constant 0 : index
    %c0_0 = arith.constant 0 : index
    %c0_1 = arith.constant 0 : index
    %0 = vector.load %arg1[%c0, %c0_0, %c0_1] : memref<1x64x256xf32, #tpu.memory_space<vmem>>, vector<1x64x256xf32>
    %1 = vector.shape_cast %0 : vector<1x64x256xf32> to vector<64x256xf32>
    %cst = arith.constant 3.906250e-03 : f32
    %2 = vector.broadcast %cst : f32 to vector<256x1xf32>
    %cst_2 = arith.constant dense<0.000000e+00> : vector<64x1xf32>
    %3 = tpu.matmul %1, %2, %cst_2 {dimension_numbers = #tpu.dot_dimension_numbers<[1], [0], [0], [1], [0, 0, 1, 1], [], []>} : vector<64x256xf32>, vector<256x1xf32>, vector<64x1xf32> -> vector<64x1xf32>
    %c0_3 = arith.constant 0 : index
    %c0_4 = arith.constant 0 : index
    %4 = vector.load %arg2[%c0_3, %c0_4] : memref<16x64xf32, #tpu.memory_space<vmem>>, vector<16x64xf32>
    %cst_5 = arith.constant dense<0.000000e+00> : vector<16x1xf32>
    %5 = tpu.matmul %4, %3, %cst_5 {dimension_numbers = #tpu.dot_dimension_numbers<[1], [0], [0], [1], [0, 0, 1, 1], [], []>} : vector<16x64xf32>, vector<64x1xf32>, vector<16x1xf32> -> vector<16x1xf32>
    %cst_6 = arith.constant 0.000000e+00 : f32
    %6 = vector.broadcast %cst_6 : f32 to vector<16x1xf32>
    %7 = arith.maximumf %5, %6 : vector<16x1xf32>
    %c0_7 = arith.constant 0 : index
    %c0_8 = arith.constant 0 : index
    %8 = vector.load %arg3[%c0_7, %c0_8] : memref<64x16xf32, #tpu.memory_space<vmem>>, vector<64x16xf32>
    %cst_9 = arith.constant dense<0.000000e+00> : vector<64x1xf32>
    %9 = tpu.matmul %8, %7, %cst_9 {dimension_numbers = #tpu.dot_dimension_numbers<[1], [0], [0], [1], [0, 0, 1, 1], [], []>} : vector<64x16xf32>, vector<16x1xf32>, vector<64x1xf32> -> vector<64x1xf32>
    %cst_10 = arith.constant 3.000000e+00 : f32
    %10 = vector.broadcast %cst_10 : f32 to vector<64x1xf32>
    %11 = arith.addf %9, %10 : vector<64x1xf32>
    %cst_11 = arith.constant 0.000000e+00 : f32
    %cst_12 = arith.constant 6.000000e+00 : f32
    %12 = vector.broadcast %cst_11 : f32 to vector<64x1xf32>
    %13 = arith.maximumf %12, %11 : vector<64x1xf32>
    %14 = vector.broadcast %cst_12 : f32 to vector<64x1xf32>
    %15 = arith.minimumf %14, %13 : vector<64x1xf32>
    %cst_13 = arith.constant 0.166666672 : f32
    %16 = vector.broadcast %cst_13 : f32 to vector<64x1xf32>
    %17 = arith.mulf %15, %16 : vector<64x1xf32>
    %18 = vector.broadcast %17 : vector<64x1xf32> to vector<64x256xf32>
    %19 = arith.mulf %1, %18 : vector<64x256xf32>
    %c0_14 = arith.constant 0 : index
    %c0_15 = arith.constant 0 : index
    %c0_16 = arith.constant 0 : index
    %20 = vector.load %arg4[%c0_14, %c0_15, %c0_16] : memref<1x64x256xf32, #tpu.memory_space<vmem>>, vector<1x64x256xf32>
    %21 = vector.shape_cast %20 : vector<1x64x256xf32> to vector<64x256xf32>
    %22 = vector.shape_cast %19 : vector<64x256xf32> to vector<1x64x256xf32>
    tpu.vector_store %arg4[%c0_14, %c0_15, %c0_16], %22 {strides = array<i32>} : memref<1x64x256xf32, #tpu.memory_space<vmem>>, vector<1x64x256xf32>,
    return
  }
  func.func @transform_0(%arg0: i32) -> (i32, i32, i32) {
    %c0_i32 = arith.constant 0 : i32
    %c0_i32_0 = arith.constant 0 : i32
    %c0_i32_1 = arith.constant 0 : i32
    return %arg0, %c0_i32, %c0_i32_0 : i32, i32, i32
  }
  func.func @transform_1(%arg0: i32) -> (i32, i32) {
    %c0_i32 = arith.constant 0 : i32
    %c0_i32_0 = arith.constant 0 : i32
    %c0_i32_1 = arith.constant 0 : i32
    return %c0_i32, %c0_i32_0 : i32, i32
  }
  func.func @transform_2(%arg0: i32) -> (i32, i32) {
    %c0_i32 = arith.constant 0 : i32
    %c0_i32_0 = arith.constant 0 : i32
    %c0_i32_1 = arith.constant 0 : i32
    return %c0_i32, %c0_i32_0 : i32, i32
  }
  func.func @transform_3(%arg0: i32) -> (i32, i32, i32) {
    %c0_i32 = arith.constant 0 : i32
    %c0_i32_0 = arith.constant 0 : i32
    %c0_i32_1 = arith.constant 0 : i32
    return %arg0, %c0_i32, %c0_i32_0 : i32, i32, i32
  }
}

</mosaic_0001>

<llo_original>
// kernel: se_module.1
$region0: #{se_module.1}
  #allocation0 [shape = 'u32[]', space=smem, size = 0x4, offset = 0x4, fixed_abs, tag = 'smem constant byte address 0x4 - core index']
  #allocation1 [shape = 'u32[144,128]{1,0:T(1,128)}', space=vmem, size = 0x12000, scoped, tag = 'internal scratch']
  %s0 = inlined_call_operand.vmem [shape: f32[2,64,256], index: 0, kind: input, shape index: {}]
  %s1 = inlined_call_operand.vmem [shape: f32[16,64], index: 1, kind: input, shape index: {}]
  %s2 = inlined_call_operand.vmem [shape: f32[64,16], index: 2, kind: input, shape index: {}]
  %s3 = inlined_call_operand.vmem [shape: f32[2,64,256], index: 3, kind: output, shape index: {}]
  %s4 = sld [smem:[#allocation0]]
  $region45: #{se_module.1} parent=0
    _
  %s6 = ssub.s32 1, %s4
  %s7 = scalar_select 0, %s6, %s4
  loop: start=0, step=1, limit=4
  $region2: #{se_module.1} parent=0 // loop_pre_header
    _
  $region3: #{se_module.1} parent=0 // loop_header
    %s9 = sphi 0, %s13
    %p10 = scmp.ge.s32.totalorder %s9, 4
    %s19 = sphi 0, %s21
    %s22 = sphi 0, %s19
    %s23 = sphi 0, %s22
    %s39 = sphi 0, %s23
    %s43 = sphi 0, %s43
    %s45 = sphi 0, %s43
    %s46 = sphi 0, %s45
    %s60 = sphi 0, %s46
    %s64 = sphi 0, %s64
    %s66 = sphi 0, %s64
    %s67 = sphi 0, %s66
    %s81 = sphi 0, %s67
    %s87 = sphi 0, %s89
    %s90 = sphi 0, %s87
    %s91 = sphi 0, %s90
    %s107 = sphi 0, %s91
  $region4: #{se_module.1} parent=0 // loop_header_branch
    %12 = sbr.rel (%p10) target = $region8
  $region5: #{se_module.1} parent=0 // loop_body
    %s14 = ssub.s32 %s9, 1
    %s15 = ssub.s32 %s9, 2
    %s16 = sadd.s32 %s9, 1
    %s17 = ssub.s32 %s9, %s16
    %p18 = scmp.eq.s32.totalorder %s17, 0
    %s20 = sadd.s32 %s19, 1
    %s21 = scalar_select %p18, %s19, %s20
    %p24 = pneg %p18
    %p25 = scmp.eq.s32.totalorder %s9, 1
    %p26 = por %p24, %p25
    %p27 = scmp.ne.s32.totalorder %s19, %s22
    %p28 = scmp.eq.s32.totalorder %s9, 0
    %p29 = por %p27, %p28
    %p30 = scmp.ne.s32.totalorder %s19, %s22
    %p31 = scmp.eq.s32.totalorder %s14, 1
    %p32 = por %p30, %p31
    %p33 = scmp.ne.s32.totalorder %s22, %s23
    %p34 = scmp.eq.s32.totalorder %s14, 0
    %p35 = por %p33, %p34
    %p36 = scmp.ne.s32.totalorder %s22, %s23
    %p37 = scmp.eq.s32.totalorder %s15, 1
    %p38 = por %p36, %p37
    %p40 = scmp.ne.s32.totalorder %s23, %s39
    %p41 = scmp.eq.s32.totalorder %s15, 0
    %p42 = por %p40, %p41
    %s44 = sadd.s32 %s43, 1
    %p47 = scmp.eq.s32.totalorder %s9, 1
    %p48 = scmp.ne.s32.totalorder %s43, %s45
    %p49 = scmp.eq.s32.totalorder %s9, 0
    %p50 = por %p48, %p49
    %p51 = scmp.ne.s32.totalorder %s43, %s45
    %p52 = scmp.eq.s32.totalorder %s14, 1
    %p53 = por %p51, %p52
    %p54 = scmp.ne.s32.totalorder %s45, %s46
    %p55 = scmp.eq.s32.totalorder %s14, 0
    %p56 = por %p54, %p55
    %p57 = scmp.ne.s32.totalorder %s45, %s46
    %p58 = scmp.eq.s32.totalorder %s15, 1
    %p59 = por %p57, %p58
    %p61 = scmp.ne.s32.totalorder %s46, %s60
    %p62 = scmp.eq.s32.totalorder %s15, 0
    %p63 = por %p61, %p62
    %s65 = sadd.s32 %s64, 1
    %p68 = scmp.eq.s32.totalorder %s9, 1
    %p69 = scmp.ne.s32.totalorder %s64, %s66
    %p70 = scmp.eq.s32.totalorder %s9, 0
    %p71 = por %p69, %p70
    %p72 = scmp.ne.s32.totalorder %s64, %s66
    %p73 = scmp.eq.s32.totalorder %s14, 1
    %p74 = por %p72, %p73
    %p75 = scmp.ne.s32.totalorder %s66, %s67
    %p76 = scmp.eq.s32.totalorder %s14, 0
    %p77 = por %p75, %p76
    %p78 = scmp.ne.s32.totalorder %s66, %s67
    %p79 = scmp.eq.s32.totalorder %s15, 1
    %p80 = por %p78, %p79
    %p82 = scmp.ne.s32.totalorder %s67, %s81
    %p83 = scmp.eq.s32.totalorder %s15, 0
    %p84 = por %p82, %p83
    %s85 = ssub.s32 %s9, %s16
    %p86 = scmp.eq.s32.totalorder %s85, 0
    %s88 = sadd.s32 %s87, 1
    %s89 = scalar_select %p86, %s87, %s88
    %p92 = pneg %p86
    %p93 = scmp.eq.s32.totalorder %s9, 1
    %p94 = por %p92, %p93
    %p95 = scmp.ne.s32.totalorder %s87, %s90
    %p96 = scmp.eq.s32.totalorder %s9, 0
    %p97 = por %p95, %p96
    %p98 = scmp.ne.s32.totalorder %s87, %s90
    %p99 = scmp.eq.s32.totalorder %s14, 1
    %p100 = por %p98, %p99
    %p101 = scmp.ne.s32.totalorder %s90, %s91
    %p102 = scmp.eq.s32.totalorder %s14, 0
    %p103 = por %p101, %p102
    %p104 = scmp.ne.s32.totalorder %s90, %s91
    %p105 = scmp.eq.s32.totalorder %s15, 1
    %p106 = por %p104, %p105
    %p108 = scmp.ne.s32.totalorder %s91, %s107
    %p109 = scmp.eq.s32.totalorder %s15, 0
    %p110 = por %p108, %p109
    %p111 = scmp.le.s32.totalorder 1, %s9
    %p112 = scmp.lt.s32.totalorder %s9, 3
    %p113 = pnand %p111, %p112
    %p114 = pneg %p113
    // Predicated region
    $region9: #{se_module.1} parent=5 // pred_check
      _
    $region10: #{se_module.1} parent=5 // pred_check_branch
      %116 = sbr.rel (%p113) target = $region12
    $region11: #{se_module.1} parent=5 // pred_region
      %s117 = ssub.s32 %s9, 1
      // Predicated region
      $region13: #{se_module.1} parent=11 // pred_check
        %p118 = pneg %p56
      $region14: #{se_module.1} parent=11 // pred_check_branch
        %120 = sbr.rel (%p118) target = $region16
      $region15: #{se_module.1} parent=11 // pred_region
        _
      $region16: #{se_module.1} parent=11 // pred_fallthru
        _
      // Predicated region
      $region17: #{se_module.1} parent=11 // pred_check
        %p121 = pneg %p77
      $region18: #{se_module.1} parent=11 // pred_check_branch
        %123 = sbr.rel (%p121) target = $region20
      $region19: #{se_module.1} parent=11 // pred_region
        _
      $region20: #{se_module.1} parent=11 // pred_fallthru
        _
    $region12: #{se_module.1} parent=5 // pred_fallthru
      _
    %p124 = scmp.lt.s32.totalorder %s9, 2
    // Predicated region
    $region21: #{se_module.1} parent=5 // pred_check
      %p125 = pneg %p124
    $region22: #{se_module.1} parent=5 // pred_check_branch
      %127 = sbr.rel (%p125) target = $region24
    $region23: #{se_module.1} parent=5 // pred_region
      // Predicated region
      $region25: #{se_module.1} parent=23 // pred_check
        %p128 = pneg %p29
      $region26: #{se_module.1} parent=23 // pred_check_branch
        %130 = sbr.rel (%p128) target = $region28
      $region27: #{se_module.1} parent=23 // pred_region
        %p131 = scmp.lt.s32.totalorder %s9, 1
        %s132 = scalar_select %p131, %s9, 1
        %s133 = smul.addr %s132, 16
        %s134 = smul.addr %s133, 8
        %s135 = scalar_lea.vmem %s0, %s134
      $region28: #{se_module.1} parent=23 // pred_fallthru
        _
    $region24: #{se_module.1} parent=5 // pred_fallthru
      _
    %p136 = scmp.le.s32.totalorder 1, %s9
    %p137 = scmp.lt.s32.totalorder %s9, 3
    %p138 = pnand %p136, %p137
    %p139 = pneg %p138
    // Predicated region
    $region29: #{se_module.1} parent=5 // pred_check
      _
    $region30: #{se_module.1} parent=5 // pred_check_branch
      %141 = sbr.rel (%p138) target = $region32
    $region31: #{se_module.1} parent=5 // pred_region
      %s142 = ssub.s32 %s9, 1
      %p143 = scmp.lt.s32.totalorder %s14, 1
      %s144 = scalar_select %p143, %s14, 1
      %s145 = smul.addr %s144, 16
      %s146 = smul.addr %s145, 8
      %s147 = scalar_lea.vmem %s0, %s146
      %p148 = pneg %p35
      %p149 = pneg %p32
      %p150 = pneg %p56
      %p151 = pneg %p53
      %p152 = pneg %p77
      %p153 = pneg %p74
      %p154 = pneg %p103
      %p155 = pneg %p100
      %p156 = scmp.lt.s32.totalorder %s14, 1
      %s157 = scalar_select %p156, %s14, 1
      %s158 = smul.addr %s157, 16
      %s159 = smul.addr %s158, 8
      %s160 = scalar_lea.vmem %s3, %s159
      %p161 = scmp.lt.s32.totalorder %s14, 1
      %s162 = scalar_select %p161, %s14, 1
      %s163 = smul.addr %s162, 16
      %s164 = smul.addr %s163, 8
      %s165 = scalar_lea.vmem %s0, %s164
      %p166 = scmp.lt.s32.totalorder %s14, 1
      %s167 = scalar_select %p166, %s14, 1
      %s168 = smul.addr %s167, 16
      %s169 = smul.addr %s168, 8
      %s170 = scalar_lea.vmem %s3, %s169
      %v171 = vld [vmem:[%s165] sm:$0xff]
      %v172 = vld [vmem:[%s165 + $0x8] sm:$0xff]
      %v173 = vld [vmem:[%s165 + $0x10] sm:$0xff]
      %v174 = vld [vmem:[%s165 + $0x18] sm:$0xff]
      %v175 = vld [vmem:[%s165 + $0x20] sm:$0xff]
      %v176 = vld [vmem:[%s165 + $0x28] sm:$0xff]
      %v177 = vld [vmem:[%s165 + $0x30] sm:$0xff]
      %v178 = vld [vmem:[%s165 + $0x38] sm:$0xff]
      %v179 = vld [vmem:[%s165 + $0x40] sm:$0xff]
      %v180 = vld [vmem:[%s165 + $0x48] sm:$0xff]
      %v181 = vld [vmem:[%s165 + $0x50] sm:$0xff]
      %v182 = vld [vmem:[%s165 + $0x58] sm:$0xff]
      %v183 = vld [vmem:[%s165 + $0x60] sm:$0xff]
      %v184 = vld [vmem:[%s165 + $0x68] sm:$0xff]
      %v185 = vld [vmem:[%s165 + $0x70] sm:$0xff]
      %v186 = vld [vmem:[%s165 + $0x78] sm:$0xff]
      %187 = vmatprep.subr.mxu0 0.0
      %188 = vmatpush1.msra.mxu0 0.00390625
      %189 = vmatprep.subr.mxu0 0.0
      %190 = vmatpush1.msra.mxu0 0.00390625
      %191 = vmatprep.subr.mxu0 0.0
      %192 = vmatpush1.msra.mxu0 0.00390625
      %193 = vmatprep.subr.mxu0 0.0
      %194 = vmatpush1.msra.mxu0 0.00390625
      %195 = vmatprep.subr.mxu0 0.0
      %196 = vmatpush1.msra.mxu0 0.00390625
      %197 = vmatprep.subr.mxu0 0.0
      %198 = vmatpush1.msra.mxu0 0.00390625
      %199 = vmatprep.subr.mxu0 0.0
      %200 = vmatpush1.msra.mxu0 0.00390625
      %201 = vmatprep.subr.mxu0 0.0
      %202 = vmatpush1.msra.mxu0 0.00390625
      %203 = vmatprep.subr.mxu0 0.0
      %204 = vmatpush1.msra.mxu0 0.00390625
      %205 = vmatprep.subr.mxu0 0.0
      %206 = vmatpush1.msra.mxu0 0.00390625
      %207 = vmatprep.subr.mxu0 0.0
      %208 = vmatpush1.msra.mxu0 0.00390625
      %209 = vmatprep.subr.mxu0 0.0
      %210 = vmatpush1.msra.mxu0 0.00390625
      %211 = vmatprep.subr.mxu0 0.0
      %212 = vmatpush1.msra.mxu0 0.00390625
      %213 = vmatprep.subr.mxu0 0.0
      %214 = vmatpush1.msra.mxu0 0.00390625
      %215 = vmatprep.subr.mxu0 0.0
      %216 = vmatpush1.msra.mxu0 0.00390625
      %217 = vmatprep.subr.mxu0 0.0
      %218 = vmatpush1.msra.mxu0 0.00390625
      %219 = vmatprep.subr.mxu0 0.0
      %220 = vmatpush1.msra.mxu0 0.00390625
      %221 = vmatprep.subr.mxu0 0.0
      %222 = vmatpush1.msra.mxu0 0.00390625
      %223 = vmatprep.subr.mxu0 0.0
      %224 = vmatpush1.msra.mxu0 0.00390625
      %225 = vmatprep.subr.mxu0 0.0
      %226 = vmatpush1.msra.mxu0 0.00390625
      %227 = vmatprep.subr.mxu0 0.0
      %228 = vmatpush1.msra.mxu0 0.00390625
      %229 = vmatprep.subr.mxu0 0.0
      %230 = vmatpush1.msra.mxu0 0.00390625
      %231 = vmatprep.subr.mxu0 0.0
      %232 = vmatpush1.msra.mxu0 0.00390625
      %233 = vmatprep.subr.mxu0 0.0
      %234 = vmatpush1.msra.mxu0 0.00390625
      %235 = vmatprep.subr.mxu0 0.0
      %236 = vmatpush1.msra.mxu0 0.00390625
      %237 = vmatprep.subr.mxu0 0.0
      %238 = vmatpush1.msra.mxu0 0.00390625
      %239 = vmatprep.subr.mxu0 0.0
      %240 = vmatpush1.msra.mxu0 0.00390625
      %241 = vmatprep.subr.mxu0 0.0
      %242 = vmatpush1.msra.mxu0 0.00390625
      %243 = vmatprep.subr.mxu0 0.0
      %244 = vmatpush1.msra.mxu0 0.00390625
      %245 = vmatprep.subr.mxu0 0.0
      %246 = vmatpush1.msra.mxu0 0.00390625
      %247 = vmatprep.subr.mxu0 0.0
      %248 = vmatpush1.msra.mxu0 0.00390625
      %249 = vmatprep.subr.mxu0 0.0
      %250 = vmatpush1.msra.mxu0 0.00390625
      %251 = vmatprep.mubr.f32.mxu0 %v172
      %252 = vmatmul.mubr.f32.gmra.mrb[0].mxu0 %v171
      %v253 = vpop.f32.mrb[0].mxu0
      %v254 = vadd.f32 0.0, %v253
      %v255 = vpop.f32.mrb[0].mxu0
      %256 = vmatprep.mubr.f32.mxu0 %v174
      %257 = vmatmul.mubr.f32.gmra.mrb[0].mxu0 %v173
      %v258 = vpop.f32.mrb[0].mxu0
      %v259 = vadd.f32 0.0, %v258
      %v260 = vpop.f32.mrb[0].mxu0
      %261 = vmatprep.mubr.f32.mxu0 %v176
      %262 = vmatmul.mubr.f32.gmra.mrb[0].mxu0 %v175
      %v263 = vpop.f32.mrb[0].mxu0
      %v264 = vadd.f32 0.0, %v263
      %v265 = vpop.f32.mrb[0].mxu0
      %266 = vmatprep.mubr.f32.mxu0 %v178
      %267 = vmatmul.mubr.f32.gmra.mrb[0].mxu0 %v177
      %v268 = vpop.f32.mrb[0].mxu0
      %v269 = vadd.f32 0.0, %v268
      %v270 = vpop.f32.mrb[0].mxu0
      %271 = vmatprep.mubr.f32.mxu0 %v180
      %272 = vmatmul.mubr.f32.gmra.mrb[0].mxu0 %v179
      %v273 = vpop.f32.mrb[0].mxu0
      %v274 = vadd.f32 0.0, %v273
      %v275 = vpop.f32.mrb[0].mxu0
      %276 = vmatprep.mubr.f32.mxu0 %v182
      %277 = vmatmul.mubr.f32.gmra.mrb[0].mxu0 %v181
      %v278 = vpop.f32.mrb[0].mxu0
      %v279 = vadd.f32 0.0, %v278
      %v280 = vpop.f32.mrb[0].mxu0
      %281 = vmatprep.mubr.f32.mxu0 %v184
      %282 = vmatmul.mubr.f32.gmra.mrb[0].mxu0 %v183
      %v283 = vpop.f32.mrb[0].mxu0
      %v284 = vadd.f32 0.0, %v283
      %v285 = vpop.f32.mrb[0].mxu0
      %286 = vmatprep.mubr.f32.mxu0 %v186
      %287 = vmatmul.mubr.f32.gmra.mrb[0].mxu0 %v185
      %v288 = vpop.f32.mrb[0].mxu0
      %v289 = vadd.f32 0.0, %v288
      %v290 = vpop.f32.mrb[0].mxu0
      %291 = vdwg.mxu0
      %v292 = vld [vmem:[%s1] sm:$0xff]
      %v293 = vld [vmem:[%s1 + $0x8] sm:$0xff]
      %vm294 = vcmask 523264
      %v296 = vsel %vm294, %v292, 0
      %v299 = vsel %vm294, %v293, 0
      %301 = vmatprep.subr.mxu0 0.0
      %302 = vmatpush1.msra.mxu0 %v254
      %303 = vmatprep.subr.mxu0 0.0
      %304 = vmatpush1.msra.mxu0 %v259
      %305 = vmatprep.subr.mxu0 0.0
      %306 = vmatpush1.msra.mxu0 %v264
      %307 = vmatprep.subr.mxu0 0.0
      %308 = vmatpush1.msra.mxu0 %v269
      %309 = vmatprep.subr.mxu0 0.0
      %310 = vmatpush1.msra.mxu0 %v274
      %311 = vmatprep.subr.mxu0 0.0
      %312 = vmatpush1.msra.mxu0 %v279
      %313 = vmatprep.subr.mxu0 0.0
      %314 = vmatpush1.msra.mxu0 %v284
      %315 = vmatprep.subr.mxu0 0.0
      %316 = vmatpush1.msra.mxu0 %v289
      %317 = vmatprep.subr.mxu0 0.0
      %318 = vmatpush1.msra.mxu0 0.0
      %319 = vmatprep.subr.mxu0 0.0
      %320 = vmatpush1.msra.mxu0 0.0
      %321 = vmatprep.subr.mxu0 0.0
      %322 = vmatpush1.msra.mxu0 0.0
      %323 = vmatprep.subr.mxu0 0.0
      %324 = vmatpush1.msra.mxu0 0.0
      %325 = vmatprep.subr.mxu0 0.0
      %326 = vmatpush1.msra.mxu0 0.0
      %327 = vmatprep.subr.mxu0 0.0
      %328 = vmatpush1.msra.mxu0 0.0
      %329 = vmatprep.subr.mxu0 0.0
      %330 = vmatpush1.msra.mxu0 0.0
      %331 = vmatprep.subr.mxu0 0.0
      %332 = vmatpush1.msra.mxu0 0.0
      %333 = vmatprep.subr.mxu0 0.0
      %334 = vmatpush1.msra.mxu0 0.0
      %335 = vmatprep.subr.mxu0 0.0
      %336 = vmatpush1.msra.mxu0 0.0
      %337 = vmatprep.subr.mxu0 0.0
      %338 = vmatpush1.msra.mxu0 0.0
      %339 = vmatprep.subr.mxu0 0.0
      %340 = vmatpush1.msra.mxu0 0.0
      %341 = vmatprep.subr.mxu0 0.0
      %342 = vmatpush1.msra.mxu0 0.0
      %343 = vmatprep.subr.mxu0 0.0
      %344 = vmatpush1.msra.mxu0 0.0
      %345 = vmatprep.subr.mxu0 0.0
      %346 = vmatpush1.msra.mxu0 0.0
      %347 = vmatprep.subr.mxu0 0.0
      %348 = vmatpush1.msra.mxu0 0.0
      %349 = vmatprep.subr.mxu0 0.0
      %350 = vmatpush1.msra.mxu0 0.0
      %351 = vmatprep.subr.mxu0 0.0
      %352 = vmatpush1.msra.mxu0 0.0
      %353 = vmatprep.subr.mxu0 0.0
      %354 = vmatpush1.msra.mxu0 0.0
      %355 = vmatprep.subr.mxu0 0.0
      %356 = vmatpush1.msra.mxu0 0.0
      %357 = vmatprep.subr.mxu0 0.0
      %358 = vmatpush1.msra.mxu0 0.0
      %359 = vmatprep.subr.mxu0 0.0
      %360 = vmatpush1.msra.mxu0 0.0
      %361 = vmatprep.subr.mxu0 0.0
      %362 = vmatpush1.msra.mxu0 0.0
      %363 = vmatprep.subr.mxu0 0.0
      %364 = vmatpush1.msra.mxu0 0.0
      %365 = vmatprep.mubr.f32.mxu0 0.0
      %366 = vmatmul.mubr.f32.gmra.mrb[0].mxu0 %v296
      %v367 = vpop.f32.mrb[0].mxu0
      %v368 = vadd.f32 0.0, %v367
      %v369 = vpop.f32.mrb[0].mxu0
      %370 = vmatprep.mubr.f32.mxu0 0.0
      %371 = vmatmul.mubr.f32.gmra.mrb[0].mxu0 %v299
      %v372 = vpop.f32.mrb[0].mxu0
      %v373 = vadd.f32 0.0, %v372
      %v374 = vpop.f32.mrb[0].mxu0
      %375 = vdwg.mxu0
      %v376 = vmax.f32 %v368, 0.0
      %v377 = vmax.f32 %v373, 0.0
      %v378 = vld [vmem:[%s2] sm:$0xff]
      %v379 = vld [vmem:[%s2 + $0x8] sm:$0xff]
      %v380 = vld [vmem:[%s2 + $0x10] sm:$0xff]
      %v381 = vld [vmem:[%s2 + $0x18] sm:$0xff]
      %v382 = vld [vmem:[%s2 + $0x20] sm:$0xff]
      %v383 = vld [vmem:[%s2 + $0x28] sm:$0xff]
      %v384 = vld [vmem:[%s2 + $0x30] sm:$0xff]
      %v385 = vld [vmem:[%s2 + $0x38] sm:$0xff]
      %vm386 = vcmask 130048
      %v388 = vsel %vm386, %v378, 0
      %v391 = vsel %vm386, %v379, 0
      %v394 = vsel %vm386, %v380, 0
      %v397 = vsel %vm386, %v381, 0
      %v400 = vsel %vm386, %v382, 0
      %v403 = vsel %vm386, %v383, 0
      %v406 = vsel %vm386, %v384, 0
      %v409 = vsel %vm386, %v385, 0
      %411 = vmatprep.subr.mxu0 0.0
      %412 = vmatpush1.msra.mxu0 %v376
      %413 = vmatprep.subr.mxu0 0.0
      %414 = vmatpush1.msra.mxu0 %v377
      %415 = vmatprep.subr.mxu0 0.0
      %416 = vmatpush1.msra.mxu0 0.0
      %417 = vmatprep.subr.mxu0 0.0
      %418 = vmatpush1.msra.mxu0 0.0
      %419 = vmatprep.subr.mxu0 0.0
      %420 = vmatpush1.msra.mxu0 0.0
      %421 = vmatprep.subr.mxu0 0.0
      %422 = vmatpush1.msra.mxu0 0.0
      %423 = vmatprep.subr.mxu0 0.0
      %424 = vmatpush1.msra.mxu0 0.0
      %425 = vmatprep.subr.mxu0 0.0
      %426 = vmatpush1.msra.mxu0 0.0
      %427 = vmatprep.subr.mxu0 0.0
      %428 = vmatpush1.msra.mxu0 0.0
      %429 = vmatprep.subr.mxu0 0.0
      %430 = vmatpush1.msra.mxu0 0.0
      %431 = vmatprep.subr.mxu0 0.0
      %432 = vmatpush1.msra.mxu0 0.0
      %433 = vmatprep.subr.mxu0 0.0
      %434 = vmatpush1.msra.mxu0 0.0
      %435 = vmatprep.subr.mxu0 0.0
      %436 = vmatpush1.msra.mxu0 0.0
      %437 = vmatprep.subr.mxu0 0.0
      %438 = vmatpush1.msra.mxu0 0.0
      %439 = vmatprep.subr.mxu0 0.0
      %440 = vmatpush1.msra.mxu0 0.0
      %441 = vmatprep.subr.mxu0 0.0
      %442 = vmatpush1.msra.mxu0 0.0
      %443 = vmatprep.subr.mxu0 0.0
      %444 = vmatpush1.msra.mxu0 0.0
      %445 = vmatprep.subr.mxu0 0.0
      %446 = vmatpush1.msra.mxu0 0.0
      %447 = vmatprep.subr.mxu0 0.0
      %448 = vmatpush1.msra.mxu0 0.0
      %449 = vmatprep.subr.mxu0 0.0
      %450 = vmatpush1.msra.mxu0 0.0
      %451 = vmatprep.subr.mxu0 0.0
      %452 = vmatpush1.msra.mxu0 0.0
      %453 = vmatprep.subr.mxu0 0.0
      %454 = vmatpush1.msra.mxu0 0.0
      %455 = vmatprep.subr.mxu0 0.0
      %456 = vmatpush1.msra.mxu0 0.0
      %457 = vmatprep.subr.mxu0 0.0
      %458 = vmatpush1.msra.mxu0 0.0
      %459 = vmatprep.subr.mxu0 0.0
      %460 = vmatpush1.msra.mxu0 0.0
      %461 = vmatprep.subr.mxu0 0.0
      %462 = vmatpush1.msra.mxu0 0.0
      %463 = vmatprep.subr.mxu0 0.0
      %464 = vmatpush1.msra.mxu0 0.0
      %465 = vmatprep.subr.mxu0 0.0
      %466 = vmatpush1.msra.mxu0 0.0
      %467 = vmatprep.subr.mxu0 0.0
      %468 = vmatpush1.msra.mxu0 0.0
      %469 = vmatprep.subr.mxu0 0.0
      %470 = vmatpush1.msra.mxu0 0.0
      %471 = vmatprep.subr.mxu0 0.0
      %472 = vmatpush1.msra.mxu0 0.0
      %473 = vmatprep.subr.mxu0 0.0
      %474 = vmatpush1.msra.mxu0 0.0
      %475 = vmatprep.mubr.f32.mxu0 0.0
      %476 = vmatmul.mubr.f32.gmra.mrb[0].mxu0 %v388
      %v477 = vpop.f32.mrb[0].mxu0
      %v478 = vadd.f32 3.0, %v477
      %v479 = vpop.f32.mrb[0].mxu0
      %480 = vmatprep.mubr.f32.mxu0 0.0
      %481 = vmatmul.mubr.f32.gmra.mrb[0].mxu0 %v391
      %v482 = vpop.f32.mrb[0].mxu0
      %v483 = vadd.f32 3.0, %v482
      %v484 = vpop.f32.mrb[0].mxu0
      %485 = vmatprep.mubr.f32.mxu0 0.0
      %486 = vmatmul.mubr.f32.gmra.mrb[0].mxu0 %v394
      %v487 = vpop.f32.mrb[0].mxu0
      %v488 = vadd.f32 3.0, %v487
      %v489 = vpop.f32.mrb[0].mxu0
      %490 = vmatprep.mubr.f32.mxu0 0.0
      %491 = vmatmul.mubr.f32.gmra.mrb[0].mxu0 %v397
      %v492 = vpop.f32.mrb[0].mxu0
      %v493 = vadd.f32 3.0, %v492
      %v494 = vpop.f32.mrb[0].mxu0
      %495 = vmatprep.mubr.f32.mxu0 0.0
      %496 = vmatmul.mubr.f32.gmra.mrb[0].mxu0 %v400
      %v497 = vpop.f32.mrb[0].mxu0
      %v498 = vadd.f32 3.0, %v497
      %v499 = vpop.f32.mrb[0].mxu0
      %500 = vmatprep.mubr.f32.mxu0 0.0
      %501 = vmatmul.mubr.f32.gmra.mrb[0].mxu0 %v403
      %v502 = vpop.f32.mrb[0].mxu0
      %v503 = vadd.f32 3.0, %v502
      %v504 = vpop.f32.mrb[0].mxu0
      %505 = vmatprep.mubr.f32.mxu0 0.0
      %506 = vmatmul.mubr.f32.gmra.mrb[0].mxu0 %v406
      %v507 = vpop.f32.mrb[0].mxu0
      %v508 = vadd.f32 3.0, %v507
      %v509 = vpop.f32.mrb[0].mxu0
      %510 = vmatprep.mubr.f32.mxu0 0.0
      %511 = vmatmul.mubr.f32.gmra.mrb[0].mxu0 %v409
      %v512 = vpop.f32.mrb[0].mxu0
      %v513 = vadd.f32 3.0, %v512
      %v514 = vpop.f32.mrb[0].mxu0
      %515 = vdwg.mxu0
      %v516 = vmax.f32 %v478, 0.0
      %v517 = vmax.f32 %v483, 0.0
      %v518 = vmax.f32 %v488, 0.0
      %v519 = vmax.f32 %v493, 0.0
      %v520 = vmax.f32 %v498, 0.0
      %v521 = vmax.f32 %v503, 0.0
      %v522 = vmax.f32 %v508, 0.0
      %v523 = vmax.f32 %v513, 0.0
      %v524 = vmin.f32 %v516, 6.0
      %v525 = vmin.f32 %v517, 6.0
      %v526 = vmin.f32 %v518, 6.0
      %v527 = vmin.f32 %v519, 6.0
      %v528 = vmin.f32 %v520, 6.0
      %v529 = vmin.f32 %v521, 6.0
      %v530 = vmin.f32 %v522, 6.0
      %v531 = vmin.f32 %v523, 6.0
      %v532 = vmul.f32 %v524, 0.16666667
      %v533 = vmul.f32 %v525, 0.16666667
      %v534 = vmul.f32 %v526, 0.16666667
      %v535 = vmul.f32 %v527, 0.16666667
      %v536 = vmul.f32 %v528, 0.16666667
      %v537 = vmul.f32 %v529, 0.16666667
      %v538 = vmul.f32 %v530, 0.16666667
      %v539 = vmul.f32 %v531, 0.16666667
      %541 = vset.pattern.permute.xlu0 0
      %542 = vperm.xlu0 %541, %v532
      %v543 = vpop.permute.xlu0 %542
      %546 = vset.pattern.permute.xlu0 0
      %547 = vperm.xlu0 %546, %v533
      %v548 = vpop.permute.xlu0 %547
      %551 = vset.pattern.permute.xlu0 0
      %552 = vperm.xlu0 %551, %v534
      %v553 = vpop.permute.xlu0 %552
      %556 = vset.pattern.permute.xlu0 0
      %557 = vperm.xlu0 %556, %v535
      %v558 = vpop.permute.xlu0 %557
      %561 = vset.pattern.permute.xlu0 0
      %562 = vperm.xlu0 %561, %v536
      %v563 = vpop.permute.xlu0 %562
      %566 = vset.pattern.permute.xlu0 0
      %567 = vperm.xlu0 %566, %v537
      %v568 = vpop.permute.xlu0 %567
      %571 = vset.pattern.permute.xlu0 0
      %572 = vperm.xlu0 %571, %v538
      %v573 = vpop.permute.xlu0 %572
      %576 = vset.pattern.permute.xlu0 0
      %577 = vperm.xlu0 %576, %v539
      %v578 = vpop.permute.xlu0 %577
      %v580 = vmul.f32 %v171, %v543
      %v581 = vmul.f32 %v172, %v543
      %v582 = vmul.f32 %v173, %v548
      %v583 = vmul.f32 %v174, %v548
      %v584 = vmul.f32 %v175, %v553
      %v585 = vmul.f32 %v176, %v553
      %v586 = vmul.f32 %v177, %v558
      %v587 = vmul.f32 %v178, %v558
      %v588 = vmul.f32 %v179, %v563
      %v589 = vmul.f32 %v180, %v563
      %v590 = vmul.f32 %v181, %v568
      %v591 = vmul.f32 %v182, %v568
      %v592 = vmul.f32 %v183, %v573
      %v593 = vmul.f32 %v184, %v573
      %v594 = vmul.f32 %v185, %v578
      %v595 = vmul.f32 %v186, %v578
      %596 = vst [vmem:[%s170] sm:$0xff] %v580
      %597 = vst [vmem:[%s170 + $0x8] sm:$0xff] %v581
      %598 = vst [vmem:[%s170 + $0x10] sm:$0xff] %v582
      %599 = vst [vmem:[%s170 + $0x18] sm:$0xff] %v583
      %600 = vst [vmem:[%s170 + $0x20] sm:$0xff] %v584
      %601 = vst [vmem:[%s170 + $0x28] sm:$0xff] %v585
      %602 = vst [vmem:[%s170 + $0x30] sm:$0xff] %v586
      %603 = vst [vmem:[%s170 + $0x38] sm:$0xff] %v587
      %604 = vst [vmem:[%s170 + $0x40] sm:$0xff] %v588
      %605 = vst [vmem:[%s170 + $0x48] sm:$0xff] %v589
      %606 = vst [vmem:[%s170 + $0x50] sm:$0xff] %v590
      %607 = vst [vmem:[%s170 + $0x58] sm:$0xff] %v591
      %608 = vst [vmem:[%s170 + $0x60] sm:$0xff] %v592
      %609 = vst [vmem:[%s170 + $0x68] sm:$0xff] %v593
      %610 = vst [vmem:[%s170 + $0x70] sm:$0xff] %v594
      %611 = vst [vmem:[%s170 + $0x78] sm:$0xff] %v595
      %p612 = scmp.lt.s32.totalorder %s14, 1
      %s613 = scalar_select %p612, %s14, 1
      %s614 = smul.addr %s613, 16
      %s615 = smul.addr %s614, 8
      %s616 = scalar_lea.vmem %s3, %s615
      // Predicated region
      $region33: #{se_module.1} parent=31 // pred_check
        %p617 = pneg %p100
      $region34: #{se_module.1} parent=31 // pred_check_branch
        %619 = sbr.rel (%p617) target = $region36
      $region35: #{se_module.1} parent=31 // pred_region
        _
      $region36: #{se_module.1} parent=31 // pred_fallthru
        _
    $region32: #{se_module.1} parent=5 // pred_fallthru
      _
    %p620 = scmp.le.s32.totalorder 2, %s9
    // Predicated region
    $region37: #{se_module.1} parent=5 // pred_check
      %p621 = pneg %p620
    $region38: #{se_module.1} parent=5 // pred_check_branch
      %623 = sbr.rel (%p621) target = $region40
    $region39: #{se_module.1} parent=5 // pred_region
      %s624 = ssub.s32 %s9, 2
      // Predicated region
      $region41: #{se_module.1} parent=39 // pred_check
        %p625 = pneg %p106
      $region42: #{se_module.1} parent=39 // pred_check_branch
        %627 = sbr.rel (%p625) target = $region44
      $region43: #{se_module.1} parent=39 // pred_region
        %p628 = scmp.lt.s32.totalorder %s15, 1
        %s629 = scalar_select %p628, %s15, 1
        %s630 = smul.addr %s629, 16
        %s631 = smul.addr %s630, 8
        %s632 = scalar_lea.vmem %s3, %s631
      $region44: #{se_module.1} parent=39 // pred_fallthru
        _
    $region40: #{se_module.1} parent=5 // pred_fallthru
      _
  $region6: #{se_module.1} parent=0 // loop_footer
    %s13 = sadd.s32 1, %s9
  $region7: #{se_module.1} parent=0 // loop_footer_branch
    %8 = sbr.rel target = $region3
  $region8: #{se_module.1} parent=0 // loop_exit
    _

</llo_original>
